<compile_context>
chip_gen: v5e
topology: v5e:2x2
jax: 0.10.0
libtpu: 0.0.40
codegen_flags: <defaults>
</compile_context>

<pallas_src>
import functools

import jax
import jax.numpy as jnp
from jax.experimental import pallas as pl
from jax.experimental.pallas import tpu as pltpu

HIDDEN = 256          # per-head hidden width
FUSED = 2 * HIDDEN    # both heads' layer-1 outputs side by side


def _round_up(x, m):
    return (x + m - 1) // m * m


def _critic_kernel(state_ref, action_ref,
                   w1s_ref, w1a_ref, w25_ref, w36_ref, bias_ref,
                   q_ref):
    s = state_ref[...]
    a = action_ref[...]

    # ---- fused layer 1 (both heads): [TB, 512]; cols 0:256 -> Q1 head, 256:512 -> Q2 head ----
    h12 = (jnp.dot(s, w1s_ref[...], preferred_element_type=jnp.float32)
           + jnp.dot(a, w1a_ref[...], preferred_element_type=jnp.float32)
           + bias_ref[0:1, :])
    h12 = jnp.maximum(h12, 0.0)
    h = h12[:, :HIDDEN]      # Q1 head, 128-aligned lane slice (free)
    g = h12[:, HIDDEN:]      # Q2 head

    # ---- layer 2 (separate 256x256 weights per head, stacked on a leading axis) ----
    h = jnp.maximum(
        jnp.dot(h, w25_ref[0], preferred_element_type=jnp.float32)
        + bias_ref[1:2, :HIDDEN], 0.0)
    g = jnp.maximum(
        jnp.dot(g, w25_ref[1], preferred_element_type=jnp.float32)
        + bias_ref[1:2, HIDDEN:], 0.0)

    # ---- layer 3: 1-wide dots as VPU multiply + lane reduction (keeps the MXU free) ----
    q1 = jnp.sum(h * w36_ref[0:1, :], axis=-1, keepdims=True) + bias_ref[2:3, 0:1]
    q2 = jnp.sum(g * w36_ref[1:2, :], axis=-1, keepdims=True) + bias_ref[2:3, 1:2]

    q_ref[...] = jnp.concatenate([q1, q2], axis=1)


def critic_forward(state, action, packed):
    """Pallas TPU implementation of Critic.forward -> (q1, q2).

    `packed` is the output of `pack_critic_params` (pack once, reuse every step).
    """
    B, ds = state.shape
    da = action.shape[1]
    in_dim = ds + da

    # Batch tile: big enough to feed the MXU, small enough for v5e/v7x VMEM budgets.
    TB = min(256, _round_up(B, 8))
    grid = (pl.cdiv(B, TB),)

    cost = pl.CostEstimate(
        flops=2 * B * (in_dim * FUSED + 2 * HIDDEN * HIDDEN + 2 * HIDDEN),
        transcendentals=0,
        bytes_accessed=4 * (in_dim * FUSED + 2 * HIDDEN * HIDDEN + 2 * HIDDEN + 3 * FUSED)
        + 4 * B * (in_dim + 2),
    )

    q = pl.pallas_call(
        _critic_kernel,
        out_shape=jax.ShapeDtypeStruct((B, 2), jnp.float32),
        grid_spec=pltpu.PrefetchScalarGridSpec(
            num_scalar_prefetch=0,
            grid=grid,
            in_specs=[
                pl.BlockSpec((TB, ds), lambda i: (i, 0)),                    # state tile
                pl.BlockSpec((TB, da), lambda i: (i, 0)),                    # action tile
                pl.BlockSpec(packed["w1s"].shape, lambda i: (0, 0)),         # resident weights
                pl.BlockSpec(packed["w1a"].shape, lambda i: (0, 0)),
                pl.BlockSpec(packed["w25"].shape, lambda i: (0, 0, 0)),
                pl.BlockSpec(packed["w36"].shape, lambda i: (0, 0)),
                pl.BlockSpec(packed["biases"].shape, lambda i: (0, 0)),
            ],
            out_specs=pl.BlockSpec((TB, 2), lambda i: (i, 0)),
        ),
        compiler_params=pltpu.CompilerParams(
            dimension_semantics=("parallel",),   # megacore sharding of the batch axis (v7x)
        ),
        cost_estimate=cost,
    )(state, action,
      packed["w1s"], packed["w1a"], packed["w25"], packed["w36"], packed["biases"])

    return q[:, 0:1], q[:, 1:2]


def init_critic_params(key, state_dim, action_dim):
    """Deterministic init mimicking PyTorch's default U(-1/sqrt(fan_in), 1/sqrt(fan_in))."""
    in_dim = state_dim + action_dim
    dims = [
        (in_dim, HIDDEN),   # l1
        (HIDDEN, HIDDEN),   # l2
        (HIDDEN, 1),        # l3
        (in_dim, HIDDEN),   # l4
        (HIDDEN, HIDDEN),   # l5
        (HIDDEN, 1),        # l6
    ]
    params = {}
    keys = jax.random.split(key, 2 * len(dims))
    for i, (fan_in, fan_out) in enumerate(dims):
        bound = 1.0 / jnp.sqrt(jnp.float32(fan_in))
        w = jax.random.uniform(keys[2 * i], (fan_in, fan_out),
                               minval=-bound, maxval=bound, dtype=jnp.float32)
        b = jax.random.uniform(keys[2 * i + 1], (1, fan_out),
                               minval=-bound, maxval=bound, dtype=jnp.float32)
        params[f"w{i + 1}"] = w
        params[f"b{i + 1}"] = b
    return params


def pack_critic_params(params, state_dim):
    """Pack raw per-layer params into the fused/stacked arrays the kernel expects.

    Do this once after (re)loading / updating params; the packed arrays are what the
    hot forward path consumes.
    """
    # Fused layer-1 weight [in_dim, 512] (Q1 cols 0:256, Q2 cols 256:512), split by input.
    w14 = jnp.concatenate([params["w1"], params["w4"]], axis=1)          # [in_dim, 512]
    w1s = w14[:state_dim]                                                # [state_dim, 512]
    w1a = w14[state_dim:]                                                # [action_dim, 512]
    # Layer-2 weights stacked on a leading axis.
    w25 = jnp.stack([params["w2"], params["w5"]], axis=0)                # [2, 256, 256]
    # Layer-3 weight columns as rows.
    w36 = jnp.stack([params["w3"][:, 0], params["w6"][:, 0]], axis=0)    # [2, 256]
    # All biases in one small array: row0 = b1||b4, row1 = b2||b5, row2 lanes 0/1 = b3/b6.
    b14 = jnp.concatenate([params["b1"], params["b4"]], axis=1)          # [1, 512]
    b25 = jnp.concatenate([params["b2"], params["b5"]], axis=1)          # [1, 512]
    b36 = jnp.zeros((1, FUSED), jnp.float32)
    b36 = b36.at[0, 0].set(params["b3"][0, 0]).at[0, 1].set(params["b6"][0, 0])
    biases = jnp.concatenate([b14, b25, b36], axis=0)                    # [3, 512]
    return {"w1s": w1s, "w1a": w1a, "w25": w25, "w36": w36, "biases": biases}


def critic_forward_ref(state, action, params):
    """Pure-JAX reference for correctness checking (matches the PyTorch module)."""
    sa = jnp.concatenate([state, action], axis=1)
    h = jax.nn.relu(sa @ params["w1"] + params["b1"])
    h = jax.nn.relu(h @ params["w2"] + params["b2"])
    q1 = h @ params["w3"] + params["b3"]
    g = jax.nn.relu(sa @ params["w4"] + params["b4"])
    g = jax.nn.relu(g @ params["w5"] + params["b5"])
    q2 = g @ params["w6"] + params["b6"]
    return q1, q2


if __name__ == "__main__":
    key = jax.random.PRNGKey(0)
    k_params, k_state, k_action = jax.random.split(key, 3)

    batch = 2
    state_dim = 17
    action_dim = 6

    params = init_critic_params(k_params, state_dim, action_dim)
    packed = jax.block_until_ready(pack_critic_params(params, state_dim))

    state = jax.random.normal(k_state, (batch, state_dim), dtype=jnp.float32)
    action = jax.random.normal(k_action, (batch, action_dim), dtype=jnp.float32)

    q1, q2 = critic_forward(state, action, packed)
    jax.block_until_ready((q1, q2))

    q1_ref, q2_ref = critic_forward_ref(state, action, params)
    assert q1.shape == (batch, 1) and q2.shape == (batch, 1)
    assert jnp.allclose(q1, q1_ref, atol=1e-4, rtol=1e-4)
    assert jnp.allclose(q2, q2_ref, atol=1e-4, rtol=1e-4)

    print("KERNEL_OK")
</pallas_src>

<mosaic_0001>
module attributes {stable_mosaic.version = 11 : i64} {
  func.func @_critic_kernel(%arg0: i32, %arg1: memref<8x17xf32, #tpu.memory_space<vmem>>, %arg2: memref<8x6xf32, #tpu.memory_space<vmem>>, %arg3: memref<17x512xf32, #tpu.memory_space<vmem>>, %arg4: memref<6x512xf32, #tpu.memory_space<vmem>>, %arg5: memref<2x256x256xf32, #tpu.memory_space<vmem>>, %arg6: memref<2x256xf32, #tpu.memory_space<vmem>>, %arg7: memref<3x512xf32, #tpu.memory_space<vmem>>, %arg8: memref<8x2xf32, #tpu.memory_space<vmem>>) attributes {dimension_semantics = [#tpu.dimension_semantics<parallel>], iteration_bounds = array<i64: 1>, scalar_prefetch = 0 : i64, scratch_operands = 0 : i64, tpu.core_type = #tpu.core_type<tc>, window_params = [{transform_indices = @transform_0, window_bounds = array<i64: 8, 17>}, {transform_indices = @transform_1, window_bounds = array<i64: 8, 6>}, {pipeline_mode = #tpu.pipeline_mode<synchronous>, transform_indices = @transform_2, window_bounds = array<i64: 17, 512>}, {pipeline_mode = #tpu.pipeline_mode<synchronous>, transform_indices = @transform_3, window_bounds = array<i64: 6, 512>}, {pipeline_mode = #tpu.pipeline_mode<synchronous>, transform_indices = @transform_4, window_bounds = array<i64: 2, 256, 256>}, {pipeline_mode = #tpu.pipeline_mode<synchronous>, transform_indices = @transform_5, window_bounds = array<i64: 2, 256>}, {pipeline_mode = #tpu.pipeline_mode<synchronous>, transform_indices = @transform_6, window_bounds = array<i64: 3, 512>}, {transform_indices = @transform_7, window_bounds = array<i64: 8, 2>}]} {
    %c0 = arith.constant 0 : index
    %c0_0 = arith.constant 0 : index
    %0 = vector.load %arg1[%c0, %c0_0] : memref<8x17xf32, #tpu.memory_space<vmem>>, vector<8x17xf32>
    %c0_1 = arith.constant 0 : index
    %c0_2 = arith.constant 0 : index
    %1 = vector.load %arg2[%c0_1, %c0_2] : memref<8x6xf32, #tpu.memory_space<vmem>>, vector<8x6xf32>
    %c0_3 = arith.constant 0 : index
    %c0_4 = arith.constant 0 : index
    %2 = vector.load %arg3[%c0_3, %c0_4] : memref<17x512xf32, #tpu.memory_space<vmem>>, vector<17x512xf32>
    %cst = arith.constant dense<0.000000e+00> : vector<8x512xf32>
    %3 = tpu.matmul %0, %2, %cst {dimension_numbers = #tpu.dot_dimension_numbers<[1], [0], [0], [1], [0, 0, 1, 1], [], []>} : vector<8x17xf32>, vector<17x512xf32>, vector<8x512xf32> -> vector<8x512xf32>
    %c0_5 = arith.constant 0 : index
    %c0_6 = arith.constant 0 : index
    %4 = vector.load %arg4[%c0_5, %c0_6] : memref<6x512xf32, #tpu.memory_space<vmem>>, vector<6x512xf32>
    %cst_7 = arith.constant dense<0.000000e+00> : vector<8x512xf32>
    %5 = tpu.matmul %1, %4, %cst_7 {dimension_numbers = #tpu.dot_dimension_numbers<[1], [0], [0], [1], [0, 0, 1, 1], [], []>} : vector<8x6xf32>, vector<6x512xf32>, vector<8x512xf32> -> vector<8x512xf32>
    %6 = arith.addf %3, %5 : vector<8x512xf32>
    %c0_8 = arith.constant 0 : index
    %c0_9 = arith.constant 0 : index
    %7 = vector.load %arg7[%c0_8, %c0_9] : memref<3x512xf32, #tpu.memory_space<vmem>>, vector<1x512xf32>
    %8 = vector.broadcast %7 : vector<1x512xf32> to vector<8x512xf32>
    %9 = arith.addf %6, %8 : vector<8x512xf32>
    %cst_10 = arith.constant 0.000000e+00 : f32
    %10 = vector.broadcast %cst_10 : f32 to vector<8x512xf32>
    %11 = arith.maximumf %9, %10 : vector<8x512xf32>
    %12 = vector.extract_strided_slice %11 {offsets = [0, 0], sizes = [8, 256], strides = [1, 1]} : vector<8x512xf32> to vector<8x256xf32>
    %13 = vector.extract_strided_slice %11 {offsets = [0, 256], sizes = [8, 256], strides = [1, 1]} : vector<8x512xf32> to vector<8x256xf32>
    %c0_11 = arith.constant 0 : index
    %c0_12 = arith.constant 0 : index
    %c0_13 = arith.constant 0 : index
    %14 = vector.load %arg5[%c0_11, %c0_12, %c0_13] : memref<2x256x256xf32, #tpu.memory_space<vmem>>, vector<1x256x256xf32>
    %15 = vector.shape_cast %14 : vector<1x256x256xf32> to vector<256x256xf32>
    %cst_14 = arith.constant dense<0.000000e+00> : vector<8x256xf32>
    %16 = tpu.matmul %12, %15, %cst_14 {dimension_numbers = #tpu.dot_dimension_numbers<[1], [0], [0], [1], [0, 0, 1, 1], [], []>} : vector<8x256xf32>, vector<256x256xf32>, vector<8x256xf32> -> vector<8x256xf32>
    %c1 = arith.constant 1 : index
    %c0_15 = arith.constant 0 : index
    %17 = vector.load %arg7[%c1, %c0_15] : memref<3x512xf32, #tpu.memory_space<vmem>>, vector<1x256xf32>
    %18 = vector.broadcast %17 : vector<1x256xf32> to vector<8x256xf32>
    %19 = arith.addf %16, %18 : vector<8x256xf32>
    %cst_16 = arith.constant 0.000000e+00 : f32
    %20 = vector.broadcast %cst_16 : f32 to vector<8x256xf32>
    %21 = arith.maximumf %19, %20 : vector<8x256xf32>
    %c1_17 = arith.constant 1 : index
    %c0_18 = arith.constant 0 : index
    %c0_19 = arith.constant 0 : index
    %22 = vector.load %arg5[%c1_17, %c0_18, %c0_19] : memref<2x256x256xf32, #tpu.memory_space<vmem>>, vector<1x256x256xf32>
    %23 = vector.shape_cast %22 : vector<1x256x256xf32> to vector<256x256xf32>
    %cst_20 = arith.constant dense<0.000000e+00> : vector<8x256xf32>
    %24 = tpu.matmul %13, %23, %cst_20 {dimension_numbers = #tpu.dot_dimension_numbers<[1], [0], [0], [1], [0, 0, 1, 1], [], []>} : vector<8x256xf32>, vector<256x256xf32>, vector<8x256xf32> -> vector<8x256xf32>
    %c1_21 = arith.constant 1 : index
    %c256 = arith.constant 256 : index
    %25 = vector.load %arg7[%c1_21, %c256] : memref<3x512xf32, #tpu.memory_space<vmem>>, vector<1x256xf32>
    %26 = vector.broadcast %25 : vector<1x256xf32> to vector<8x256xf32>
    %27 = arith.addf %24, %26 : vector<8x256xf32>
    %cst_22 = arith.constant 0.000000e+00 : f32
    %28 = vector.broadcast %cst_22 : f32 to vector<8x256xf32>
    %29 = arith.maximumf %27, %28 : vector<8x256xf32>
    %c0_23 = arith.constant 0 : index
    %c0_24 = arith.constant 0 : index
    %30 = vector.load %arg6[%c0_23, %c0_24] : memref<2x256xf32, #tpu.memory_space<vmem>>, vector<1x256xf32>
    %31 = vector.broadcast %30 : vector<1x256xf32> to vector<8x256xf32>
    %32 = arith.mulf %21, %31 : vector<8x256xf32>
    %cst_25 = arith.constant dense<0.000000e+00> : vector<8xf32>
    %33 = vector.multi_reduction <add>, %32, %cst_25 [1] : vector<8x256xf32> to vector<8xf32>
    %34 = vector.shape_cast %33 : vector<8xf32> to vector<8x1xf32>
    %c2 = arith.constant 2 : index
    %c0_26 = arith.constant 0 : index
    %35 = vector.load %arg7[%c2, %c0_26] : memref<3x512xf32, #tpu.memory_space<vmem>>, vector<1x1xf32>
    %36 = vector.broadcast %35 : vector<1x1xf32> to vector<8x1xf32>
    %37 = arith.addf %34, %36 : vector<8x1xf32>
    %c1_27 = arith.constant 1 : index
    %c0_28 = arith.constant 0 : index
    %38 = vector.load %arg6[%c1_27, %c0_28] : memref<2x256xf32, #tpu.memory_space<vmem>>, vector<1x256xf32>
    %39 = vector.broadcast %38 : vector<1x256xf32> to vector<8x256xf32>
    %40 = arith.mulf %29, %39 : vector<8x256xf32>
    %cst_29 = arith.constant dense<0.000000e+00> : vector<8xf32>
    %41 = vector.multi_reduction <add>, %40, %cst_29 [1] : vector<8x256xf32> to vector<8xf32>
    %42 = vector.shape_cast %41 : vector<8xf32> to vector<8x1xf32>
    %c2_30 = arith.constant 2 : index
    %c1_31 = arith.constant 1 : index
    %43 = vector.load %arg7[%c2_30, %c1_31] : memref<3x512xf32, #tpu.memory_space<vmem>>, vector<1x1xf32>
    %44 = vector.broadcast %43 : vector<1x1xf32> to vector<8x1xf32>
    %45 = arith.addf %42, %44 : vector<8x1xf32>
    %46 = tpu.concatenate %37, %45 in 1 : vector<8x1xf32>, vector<8x1xf32> -> vector<8x2xf32>
    %c0_32 = arith.constant 0 : index
    %c0_33 = arith.constant 0 : index
    %47 = vector.load %arg8[%c0_32, %c0_33] : memref<8x2xf32, #tpu.memory_space<vmem>>, vector<8x2xf32>
    tpu.vector_store %arg8[%c0_32, %c0_33], %46 {strides = array<i32>} : memref<8x2xf32, #tpu.memory_space<vmem>>, vector<8x2xf32>,
    return
  }
  func.func @transform_0(%arg0: i32) -> (i32, i32) {
    %c0_i32 = arith.constant 0 : i32
    %c0_i32_0 = arith.constant 0 : i32
    return %arg0, %c0_i32 : i32, i32
  }
  func.func @transform_1(%arg0: i32) -> (i32, i32) {
    %c0_i32 = arith.constant 0 : i32
    %c0_i32_0 = arith.constant 0 : i32
    return %arg0, %c0_i32 : i32, i32
  }
  func.func @transform_2(%arg0: i32) -> (i32, i32) {
    %c0_i32 = arith.constant 0 : i32
    %c0_i32_0 = arith.constant 0 : i32
    %c0_i32_1 = arith.constant 0 : i32
    return %c0_i32, %c0_i32_0 : i32, i32
  }
  func.func @transform_3(%arg0: i32) -> (i32, i32) {
    %c0_i32 = arith.constant 0 : i32
    %c0_i32_0 = arith.constant 0 : i32
    %c0_i32_1 = arith.constant 0 : i32
    return %c0_i32, %c0_i32_0 : i32, i32
  }
  func.func @transform_4(%arg0: i32) -> (i32, i32, i32) {
    %c0_i32 = arith.constant 0 : i32
    %c0_i32_0 = arith.constant 0 : i32
    %c0_i32_1 = arith.constant 0 : i32
    %c0_i32_2 = arith.constant 0 : i32
    return %c0_i32, %c0_i32_0, %c0_i32_1 : i32, i32, i32
  }
  func.func @transform_5(%arg0: i32) -> (i32, i32) {
    %c0_i32 = arith.constant 0 : i32
    %c0_i32_0 = arith.constant 0 : i32
    %c0_i32_1 = arith.constant 0 : i32
    return %c0_i32, %c0_i32_0 : i32, i32
  }
  func.func @transform_6(%arg0: i32) -> (i32, i32) {
    %c0_i32 = arith.constant 0 : i32
    %c0_i32_0 = arith.constant 0 : i32
    %c0_i32_1 = arith.constant 0 : i32
    return %c0_i32, %c0_i32_0 : i32, i32
  }
  func.func @transform_7(%arg0: i32) -> (i32, i32) {
    %c0_i32 = arith.constant 0 : i32
    %c0_i32_0 = arith.constant 0 : i32
    return %arg0, %c0_i32 : i32, i32
  }
}

</mosaic_0001>

<llo_original>
// kernel: tpu_custom_call.1
$region0: #{tpu_custom_call.1}
  #allocation0 [shape = 'u32[]', space=smem, size = 0x4, offset = 0x4, fixed_abs, tag = 'smem constant byte address 0x4 - core index']
  #allocation1 [shape = 'u32[72,128]{1,0:T(1,128)}', space=vmem, size = 0x9000, scoped, tag = 'internal scratch']
  %s0 = inlined_call_operand.hbm [shape: f32[2,17], index: 0, kind: input, shape index: {}]
  %s1 = inlined_call_operand.hbm [shape: f32[2,6], index: 1, kind: input, shape index: {}]
  %s2 = inlined_call_operand.hbm [shape: f32[17,512], index: 2, kind: input, shape index: {}]
  %s3 = inlined_call_operand.hbm [shape: f32[6,512], index: 3, kind: input, shape index: {}]
  %s4 = inlined_call_operand.hbm [shape: f32[2,256,256], index: 4, kind: input, shape index: {}]
  %s5 = inlined_call_operand.vmem [shape: f32[2,256], index: 5, kind: input, shape index: {}]
  %s6 = inlined_call_operand.hbm [shape: f32[3,512], index: 6, kind: input, shape index: {}]
  %s7 = inlined_call_operand.hbm [shape: f32[2,2], index: 7, kind: output, shape index: {}]
  %s8 = sld [smem:[#allocation0]]
  $region62: #{tpu_custom_call.1} parent=0
    _
  %s10 = ssub.s32 1, %s8
  %s11 = scalar_select 0, %s10, %s8
  $region1: #{tpu_custom_call.1} parent=0
    #allocation2 [shape = 'u8[4096]{0}', space=vmem, size = 0x1000, scoped, tag = 'input window, operand 0, single buffered']
    #allocation3 [shape = 's32[1]{0}', space=sflag, size = 0x4, scoped, tag = 'scoped memory for tpu_custom_call.1']
    #allocation4 [shape = 's32[1]{0}', space=sflag, size = 0x4, scoped, tag = 'scoped memory for tpu_custom_call.1']
    #allocation5 [shape = 'u8[4096]{0}', space=vmem, size = 0x1000, scoped, tag = 'input window, operand 1, single buffered']
    #allocation6 [shape = 's32[1]{0}', space=sflag, size = 0x4, scoped, tag = 'scoped memory for tpu_custom_call.1']
    #allocation7 [shape = 'u8[49152]{0}', space=vmem, size = 0xc000, scoped, tag = 'input window, operand 2, single buffered']
    #allocation8 [shape = 'u8[16384]{0}', space=vmem, size = 0x4000, scoped, tag = 'input window, operand 3, single buffered']
    #allocation9 [shape = 's32[1]{0}', space=sflag, size = 0x4, scoped, tag = 'scoped memory for tpu_custom_call.1']
    #allocation10 [shape = 'u8[524288]{0}', space=vmem, size = 0x80000, scoped, tag = 'input window, operand 4, single buffered']
    #allocation11 [shape = 'u8[8192]{0}', space=vmem, size = 0x2000, scoped, tag = 'input window, operand 6, single buffered']
    #allocation12 [shape = 's32[1]{0}', space=sflag, size = 0x4, scoped, tag = 'scoped memory for tpu_custom_call.1']
    #allocation13 [shape = 'u8[4096]{0}', space=vmem, size = 0x1000, scoped, tag = 'output window, operand 0, single buffered']
    %12 = vsyncpa [#allocation3], 0
    %13 = vsyncpa [#allocation6], 0
    %14 = vsyncpa [#allocation9], 0
    %15 = vsyncpa [#allocation12], 0
    %16 = vsyncpa [#allocation4], 0
    // Predicated region
    $region2: #{tpu_custom_call.1} parent=1 // pred_check
      _
    $region3: #{tpu_custom_call.1} parent=1 // pred_check_branch
      %18 = sbr.rel (0) target = $region5
    $region4: #{tpu_custom_call.1} parent=1 // pred_region
      %20 = vsyncadd [#allocation3], 96
      %s21 = sshll.u32 %s0, 4
      %s22 = int_to_ptr.hbm [resolvable:$true] %s21
      %s23 = sshll.u32 [#allocation2], 4
      %s24 = int_to_ptr.vmem [resolvable:$true] %s23
      %29 = dma.hbm_to_vmem [thread:$0]  %s22, 32, %s24, [#allocation3], 32, 32, 2
    $region5: #{tpu_custom_call.1} parent=1 // pred_fallthru
      _
    // Predicated region
    $region6: #{tpu_custom_call.1} parent=1 // pred_check
      _
    $region7: #{tpu_custom_call.1} parent=1 // pred_check_branch
      %31 = sbr.rel (0) target = $region9
    $region8: #{tpu_custom_call.1} parent=1 // pred_region
      %33 = vsyncadd [#allocation6], 96
      %s34 = sshll.u32 %s1, 4
      %s35 = int_to_ptr.hbm [resolvable:$true] %s34
      %s36 = sshll.u32 [#allocation5], 4
      %s37 = int_to_ptr.vmem [resolvable:$true] %s36
      %42 = dma.hbm_to_vmem [thread:$0]  %s35, 32, %s37, [#allocation6], 32, 32, 2
    $region9: #{tpu_custom_call.1} parent=1 // pred_fallthru
      _
    // Predicated region
    $region10: #{tpu_custom_call.1} parent=1 // pred_check
      _
    $region11: #{tpu_custom_call.1} parent=1 // pred_check_branch
      %44 = sbr.rel (0) target = $region13
    $region12: #{tpu_custom_call.1} parent=1 // pred_region
      %46 = vsyncadd [#allocation6], 0
      %s47 = sshll.u32 %s2, 4
      %s48 = int_to_ptr.hbm [resolvable:$true] %s47
      %s49 = sshll.u32 [#allocation7], 4
      %s50 = int_to_ptr.vmem [resolvable:$true] %s49
      %55 = dma.hbm_to_vmem [thread:$0]  %s48, 1536, %s50, [#allocation6], 512, 512, 32
    $region13: #{tpu_custom_call.1} parent=1 // pred_fallthru
      _
    // Predicated region
    $region14: #{tpu_custom_call.1} parent=1 // pred_check
      _
    $region15: #{tpu_custom_call.1} parent=1 // pred_check_branch
      %57 = sbr.rel (0) target = $region17
    $region16: #{tpu_custom_call.1} parent=1 // pred_region
      %59 = vsyncadd [#allocation9], 0
      %s61 = sshll.u32 %s3, 4
      %s62 = int_to_ptr.hbm [resolvable:$true] %s61
      %s63 = sshll.u32 [#allocation8], 4
      %s64 = int_to_ptr.vmem [resolvable:$true] %s63
      %66 = dma.hbm_to_vmem [thread:$0]  %s62, 512, %s64, [#allocation9]
    $region17: #{tpu_custom_call.1} parent=1 // pred_fallthru
      _
    // Predicated region
    $region18: #{tpu_custom_call.1} parent=1 // pred_check
      _
    $region19: #{tpu_custom_call.1} parent=1 // pred_check_branch
      %68 = sbr.rel (0) target = $region21
    $region20: #{tpu_custom_call.1} parent=1 // pred_region
      %70 = vsyncadd [#allocation9], 0
      %s71 = sshll.u32 %s4, 4
      %s72 = int_to_ptr.hbm [resolvable:$true] %s71
      %s73 = sshll.u32 [#allocation10], 4
      %s74 = int_to_ptr.vmem [resolvable:$true] %s73
      %79 = dma.hbm_to_vmem [thread:$0]  %s72, 16384, %s74, [#allocation9], 256, 256, 16
    $region21: #{tpu_custom_call.1} parent=1 // pred_fallthru
      _
    // Predicated region
    $region22: #{tpu_custom_call.1} parent=1 // pred_check
      _
    $region23: #{tpu_custom_call.1} parent=1 // pred_check_branch
      %81 = sbr.rel (0) target = $region25
    $region24: #{tpu_custom_call.1} parent=1 // pred_region
      _
    $region25: #{tpu_custom_call.1} parent=1 // pred_fallthru
      _
    // Predicated region
    $region26: #{tpu_custom_call.1} parent=1 // pred_check
      _
    $region27: #{tpu_custom_call.1} parent=1 // pred_check_branch
      %83 = sbr.rel (0) target = $region29
    $region28: #{tpu_custom_call.1} parent=1 // pred_region
      %85 = vsyncadd [#allocation12], 0
      %s87 = sshll.u32 %s6, 4
      %s88 = int_to_ptr.hbm [resolvable:$true] %s87
      %s89 = sshll.u32 [#allocation11], 4
      %s90 = int_to_ptr.vmem [resolvable:$true] %s89
      %92 = dma.hbm_to_vmem [thread:$0]  %s88, 256, %s90, [#allocation12]
    $region29: #{tpu_custom_call.1} parent=1 // pred_fallthru
      _
    // Predicated region
    $region30: #{tpu_custom_call.1} parent=1 // pred_check
      _
    $region31: #{tpu_custom_call.1} parent=1 // pred_check_branch
      %94 = sbr.rel (0) target = $region33
    $region32: #{tpu_custom_call.1} parent=1 // pred_region
      %96 = dma.done [#allocation3], 128
    $region33: #{tpu_custom_call.1} parent=1 // pred_fallthru
      _
    // Predicated region
    $region34: #{tpu_custom_call.1} parent=1 // pred_check
      _
    $region35: #{tpu_custom_call.1} parent=1 // pred_check_branch
      %98 = sbr.rel (0) target = $region37
    $region36: #{tpu_custom_call.1} parent=1 // pred_region
      %100 = dma.done [#allocation6], 128
    $region37: #{tpu_custom_call.1} parent=1 // pred_fallthru
      _
    // Predicated region
    $region38: #{tpu_custom_call.1} parent=1 // pred_check
      _
    $region39: #{tpu_custom_call.1} parent=1 // pred_check_branch
      %102 = sbr.rel (0) target = $region41
    $region40: #{tpu_custom_call.1} parent=1 // pred_region
      %104 = dma.done [#allocation6], 1536
    $region41: #{tpu_custom_call.1} parent=1 // pred_fallthru
      _
    // Predicated region
    $region42: #{tpu_custom_call.1} parent=1 // pred_check
      _
    $region43: #{tpu_custom_call.1} parent=1 // pred_check_branch
      %106 = sbr.rel (0) target = $region45
    $region44: #{tpu_custom_call.1} parent=1 // pred_region
      %108 = dma.done [#allocation9], 512
    $region45: #{tpu_custom_call.1} parent=1 // pred_fallthru
      _
    // Predicated region
    $region46: #{tpu_custom_call.1} parent=1 // pred_check
      _
    $region47: #{tpu_custom_call.1} parent=1 // pred_check_branch
      %110 = sbr.rel (0) target = $region49
    $region48: #{tpu_custom_call.1} parent=1 // pred_region
      %112 = dma.done [#allocation9], 16384
    $region49: #{tpu_custom_call.1} parent=1 // pred_fallthru
      _
    // Predicated region
    $region50: #{tpu_custom_call.1} parent=1 // pred_check
      _
    $region51: #{tpu_custom_call.1} parent=1 // pred_check_branch
      %114 = sbr.rel (0) target = $region53
    $region52: #{tpu_custom_call.1} parent=1 // pred_region
      %116 = dma.done [#allocation12], 256
    $region53: #{tpu_custom_call.1} parent=1 // pred_fallthru
      _
    %v117 = vld [vmem:[#allocation2] sm:$0xff]
    %v118 = vld [vmem:[#allocation5] sm:$0xff]
    %v119 = vld [vmem:[#allocation7] sm:$0xff]
    %v120 = vld [vmem:[#allocation7 + $0x8] sm:$0xff]
    %v121 = vld [vmem:[#allocation7 + $0x10] sm:$0xff]
    %v122 = vld [vmem:[#allocation7 + $0x18] sm:$0xff]
    %v123 = vld [vmem:[#allocation7 + $0x20] sm:$0xff]
    %v124 = vld [vmem:[#allocation7 + $0x28] sm:$0xff]
    %v125 = vld [vmem:[#allocation7 + $0x30] sm:$0xff]
    %v126 = vld [vmem:[#allocation7 + $0x38] sm:$0xff]
    %v127 = vld [vmem:[#allocation7 + $0x40] sm:$0x1]
    %v128 = vld [vmem:[#allocation7 + $0x48] sm:$0x1]
    %v129 = vld [vmem:[#allocation7 + $0x50] sm:$0x1]
    %v130 = vld [vmem:[#allocation7 + $0x58] sm:$0x1]
    %v131 = vld [vmem:[#allocation8] sm:$0x3f]
    %v132 = vld [vmem:[#allocation8 + $0x8] sm:$0x3f]
    %v133 = vld [vmem:[#allocation8 + $0x10] sm:$0x3f]
    %v134 = vld [vmem:[#allocation8 + $0x18] sm:$0x3f]
    %vm135 = vcmask 48128
    %v137 = vsel %vm135, %v118, 0
    %vm139 = vcmask 1045504
    %v141 = vsel %vm139, %v131, 0
    %v144 = vsel %vm139, %v132, 0
    %v147 = vsel %vm139, %v133, 0
    %v150 = vsel %vm139, %v134, 0
    %152 = vmatpush.msra.mxu0 0.0
    %153 = vmatpush.msra.mxu0 0.0
    %154 = vmatpush.msra.mxu0 0.0
    %155 = vmatpush.msra.mxu0 0.0
    %156 = vmatpush.msra.mxu0 0.0
    %157 = vmatpush.msra.mxu0 0.0
    %158 = vmatpush.msra.mxu0 0.0
    %159 = vmatpush.msra.mxu0 0.0
    %160 = vmatpush.msra.mxu0 0.0
    %161 = vmatpush.msra.mxu0 0.0
    %162 = vmatpush.msra.mxu0 0.0
    %163 = vmatpush.msra.mxu0 0.0
    %164 = vmatpush.msra.mxu0 0.0
    %165 = vmatpush.msra.mxu0 0.0
    %166 = vmatpush.msra.mxu0 0.0
    %167 = vmatpush.msra.mxu0 %v141
    %168 = vmatmul.f32.gmra.mxu0 %v137
    %v169 = vpop.f32.mrf.mxu0
    %v170 = vadd.f32 0.0, %v169
    %171 = vdwg.mxu0
    %172 = vmatpush.msra.mxu0 0.0
    %173 = vmatpush.msra.mxu0 0.0
    %174 = vmatpush.msra.mxu0 0.0
    %175 = vmatpush.msra.mxu0 0.0
    %176 = vmatpush.msra.mxu0 0.0
    %177 = vmatpush.msra.mxu0 0.0
    %178 = vmatpush.msra.mxu0 0.0
    %179 = vmatpush.msra.mxu0 0.0
    %180 = vmatpush.msra.mxu0 0.0
    %181 = vmatpush.msra.mxu0 0.0
    %182 = vmatpush.msra.mxu0 0.0
    %183 = vmatpush.msra.mxu0 0.0
    %184 = vmatpush.msra.mxu0 0.0
    %185 = vmatpush.msra.mxu0 0.0
    %186 = vmatpush.msra.mxu0 0.0
    %187 = vmatpush.msra.mxu0 %v144
    %188 = vmatmul.f32.gmra.mxu0 %v137
    %v189 = vpop.f32.mrf.mxu0
    %v190 = vadd.f32 0.0, %v189
    %191 = vdwg.mxu0
    %192 = vmatpush.msra.mxu0 0.0
    %193 = vmatpush.msra.mxu0 0.0
    %194 = vmatpush.msra.mxu0 0.0
    %195 = vmatpush.msra.mxu0 0.0
    %196 = vmatpush.msra.mxu0 0.0
    %197 = vmatpush.msra.mxu0 0.0
    %198 = vmatpush.msra.mxu0 0.0
    %199 = vmatpush.msra.mxu0 0.0
    %200 = vmatpush.msra.mxu0 0.0
    %201 = vmatpush.msra.mxu0 0.0
    %202 = vmatpush.msra.mxu0 0.0
    %203 = vmatpush.msra.mxu0 0.0
    %204 = vmatpush.msra.mxu0 0.0
    %205 = vmatpush.msra.mxu0 0.0
    %206 = vmatpush.msra.mxu0 0.0
    %207 = vmatpush.msra.mxu0 %v147
    %208 = vmatmul.f32.gmra.mxu0 %v137
    %v209 = vpop.f32.mrf.mxu0
    %v210 = vadd.f32 0.0, %v209
    %211 = vdwg.mxu0
    %212 = vmatpush.msra.mxu0 0.0
    %213 = vmatpush.msra.mxu0 0.0
    %214 = vmatpush.msra.mxu0 0.0
    %215 = vmatpush.msra.mxu0 0.0
    %216 = vmatpush.msra.mxu0 0.0
    %217 = vmatpush.msra.mxu0 0.0
    %218 = vmatpush.msra.mxu0 0.0
    %219 = vmatpush.msra.mxu0 0.0
    %220 = vmatpush.msra.mxu0 0.0
    %221 = vmatpush.msra.mxu0 0.0
    %222 = vmatpush.msra.mxu0 0.0
    %223 = vmatpush.msra.mxu0 0.0
    %224 = vmatpush.msra.mxu0 0.0
    %225 = vmatpush.msra.mxu0 0.0
    %226 = vmatpush.msra.mxu0 0.0
    %227 = vmatpush.msra.mxu0 %v150
    %228 = vmatmul.f32.gmra.mxu0 %v137
    %v229 = vpop.f32.mrf.mxu0
    %v230 = vadd.f32 0.0, %v229
    %231 = vdwg.mxu0
    %vm232 = vcmask 138240
    %v234 = vsel %vm232, %v117, 0
    %vm236 = vcmask 1040384
    %v238 = vsel %vm236, %v127, 0
    %v241 = vsel %vm236, %v128, 0
    %v244 = vsel %vm236, %v129, 0
    %v247 = vsel %vm236, %v130, 0
    %249 = vmatpush.msra.mxu0 0.0
    %250 = vmatpush.msra.mxu0 0.0
    %251 = vmatpush.msra.mxu0 0.0
    %252 = vmatpush.msra.mxu0 0.0
    %253 = vmatpush.msra.mxu0 0.0
    %254 = vmatpush.msra.mxu0 0.0
    %255 = vmatpush.msra.mxu0 0.0
    %256 = vmatpush.msra.mxu0 0.0
    %257 = vmatpush.msra.mxu0 0.0
    %258 = vmatpush.msra.mxu0 0.0
    %259 = vmatpush.msra.mxu0 0.0
    %260 = vmatpush.msra.mxu0 0.0
    %261 = vmatpush.msra.mxu0 0.0
    %262 = vmatpush.msra.mxu0 %v238
    %263 = vmatpush.msra.mxu0 %v123
    %264 = vmatpush.msra.mxu0 %v119
    %265 = vmatmul.f32.gmra.mxu0 %v234
    %v266 = vpop.f32.mrf.mxu0
    %v267 = vadd.f32 %v170, %v266
    %268 = vdwg.mxu0
    %269 = vmatpush.msra.mxu0 0.0
    %270 = vmatpush.msra.mxu0 0.0
    %271 = vmatpush.msra.mxu0 0.0
    %272 = vmatpush.msra.mxu0 0.0
    %273 = vmatpush.msra.mxu0 0.0
    %274 = vmatpush.msra.mxu0 0.0
    %275 = vmatpush.msra.mxu0 0.0
    %276 = vmatpush.msra.mxu0 0.0
    %277 = vmatpush.msra.mxu0 0.0
    %278 = vmatpush.msra.mxu0 0.0
    %279 = vmatpush.msra.mxu0 0.0
    %280 = vmatpush.msra.mxu0 0.0
    %281 = vmatpush.msra.mxu0 0.0
    %282 = vmatpush.msra.mxu0 %v241
    %283 = vmatpush.msra.mxu0 %v124
    %284 = vmatpush.msra.mxu0 %v120
    %285 = vmatmul.f32.gmra.mxu0 %v234
    %v286 = vpop.f32.mrf.mxu0
    %v287 = vadd.f32 %v190, %v286
    %288 = vdwg.mxu0
    %289 = vmatpush.msra.mxu0 0.0
    %290 = vmatpush.msra.mxu0 0.0
    %291 = vmatpush.msra.mxu0 0.0
    %292 = vmatpush.msra.mxu0 0.0
    %293 = vmatpush.msra.mxu0 0.0
    %294 = vmatpush.msra.mxu0 0.0
    %295 = vmatpush.msra.mxu0 0.0
    %296 = vmatpush.msra.mxu0 0.0
    %297 = vmatpush.msra.mxu0 0.0
    %298 = vmatpush.msra.mxu0 0.0
    %299 = vmatpush.msra.mxu0 0.0
    %300 = vmatpush.msra.mxu0 0.0
    %301 = vmatpush.msra.mxu0 0.0
    %302 = vmatpush.msra.mxu0 %v244
    %303 = vmatpush.msra.mxu0 %v125
    %304 = vmatpush.msra.mxu0 %v121
    %305 = vmatmul.f32.gmra.mxu0 %v234
    %v306 = vpop.f32.mrf.mxu0
    %v307 = vadd.f32 %v210, %v306
    %308 = vdwg.mxu0
    %309 = vmatpush.msra.mxu0 0.0
    %310 = vmatpush.msra.mxu0 0.0
    %311 = vmatpush.msra.mxu0 0.0
    %312 = vmatpush.msra.mxu0 0.0
    %313 = vmatpush.msra.mxu0 0.0
    %314 = vmatpush.msra.mxu0 0.0
    %315 = vmatpush.msra.mxu0 0.0
    %316 = vmatpush.msra.mxu0 0.0
    %317 = vmatpush.msra.mxu0 0.0
    %318 = vmatpush.msra.mxu0 0.0
    %319 = vmatpush.msra.mxu0 0.0
    %320 = vmatpush.msra.mxu0 0.0
    %321 = vmatpush.msra.mxu0 0.0
    %322 = vmatpush.msra.mxu0 %v247
    %323 = vmatpush.msra.mxu0 %v126
    %324 = vmatpush.msra.mxu0 %v122
    %325 = vmatmul.f32.gmra.mxu0 %v234
    %v326 = vpop.f32.mrf.mxu0
    %v327 = vadd.f32 %v230, %v326
    %328 = vdwg.mxu0
    %v329 = vld [vmem:[#allocation11] ss:$4 sm:$0xf]
    %v331 = vperm.slane %v329, 0
    %v332 = vperm.slane %v329, 1
    %v333 = vperm.slane %v329, 2
    %v334 = vperm.slane %v329, 3
    %v339 = vadd.f32 %v267, %v331
    %v340 = vadd.f32 %v287, %v332
    %v341 = vadd.f32 %v307, %v333
    %v342 = vadd.f32 %v327, %v334
    %v343 = vmax.f32 %v339, 0.0
    %v344 = vmax.f32 %v340, 0.0
    %v345 = vmax.f32 %v341, 0.0
    %v346 = vmax.f32 %v342, 0.0
    %v347 = vld [vmem:[#allocation10] sm:$0xff]
    %v348 = vld [vmem:[#allocation10 + $0x8] sm:$0xff]
    %v349 = vld [vmem:[#allocation10 + $0x10] sm:$0xff]
    %v350 = vld [vmem:[#allocation10 + $0x18] sm:$0xff]
    %v351 = vld [vmem:[#allocation10 + $0x20] sm:$0xff]
    %v352 = vld [vmem:[#allocation10 + $0x28] sm:$0xff]
    %v353 = vld [vmem:[#allocation10 + $0x30] sm:$0xff]
    %v354 = vld [vmem:[#allocation10 + $0x38] sm:$0xff]
    %v355 = vld [vmem:[#allocation10 + $0x40] sm:$0xff]
    %v356 = vld [vmem:[#allocation10 + $0x48] sm:$0xff]
    %v357 = vld [vmem:[#allocation10 + $0x50] sm:$0xff]
    %v358 = vld [vmem:[#allocation10 + $0x58] sm:$0xff]
    %v359 = vld [vmem:[#allocation10 + $0x60] sm:$0xff]
    %v360 = vld [vmem:[#allocation10 + $0x68] sm:$0xff]
    %v361 = vld [vmem:[#allocation10 + $0x70] sm:$0xff]
    %v362 = vld [vmem:[#allocation10 + $0x78] sm:$0xff]
    %v363 = vld [vmem:[#allocation10 + $0x80] sm:$0xff]
    %v364 = vld [vmem:[#allocation10 + $0x88] sm:$0xff]
    %v365 = vld [vmem:[#allocation10 + $0x90] sm:$0xff]
    %v366 = vld [vmem:[#allocation10 + $0x98] sm:$0xff]
    %v367 = vld [vmem:[#allocation10 + $0xa0] sm:$0xff]
    %v368 = vld [vmem:[#allocation10 + $0xa8] sm:$0xff]
    %v369 = vld [vmem:[#allocation10 + $0xb0] sm:$0xff]
    %v370 = vld [vmem:[#allocation10 + $0xb8] sm:$0xff]
    %v371 = vld [vmem:[#allocation10 + $0xc0] sm:$0xff]
    %v372 = vld [vmem:[#allocation10 + $0xc8] sm:$0xff]
    %v373 = vld [vmem:[#allocation10 + $0xd0] sm:$0xff]
    %v374 = vld [vmem:[#allocation10 + $0xd8] sm:$0xff]
    %v375 = vld [vmem:[#allocation10 + $0xe0] sm:$0xff]
    %v376 = vld [vmem:[#allocation10 + $0xe8] sm:$0xff]
    %v377 = vld [vmem:[#allocation10 + $0xf0] sm:$0xff]
    %v378 = vld [vmem:[#allocation10 + $0xf8] sm:$0xff]
    %v379 = vld [vmem:[#allocation10 + $0x100] sm:$0xff]
    %v380 = vld [vmem:[#allocation10 + $0x108] sm:$0xff]
    %v381 = vld [vmem:[#allocation10 + $0x110] sm:$0xff]
    %v382 = vld [vmem:[#allocation10 + $0x118] sm:$0xff]
    %v383 = vld [vmem:[#allocation10 + $0x120] sm:$0xff]
    %v384 = vld [vmem:[#allocation10 + $0x128] sm:$0xff]
    %v385 = vld [vmem:[#allocation10 + $0x130] sm:$0xff]
    %v386 = vld [vmem:[#allocation10 + $0x138] sm:$0xff]
    %v387 = vld [vmem:[#allocation10 + $0x140] sm:$0xff]
    %v388 = vld [vmem:[#allocation10 + $0x148] sm:$0xff]
    %v389 = vld [vmem:[#allocation10 + $0x150] sm:$0xff]
    %v390 = vld [vmem:[#allocation10 + $0x158] sm:$0xff]
    %v391 = vld [vmem:[#allocation10 + $0x160] sm:$0xff]
    %v392 = vld [vmem:[#allocation10 + $0x168] sm:$0xff]
    %v393 = vld [vmem:[#allocation10 + $0x170] sm:$0xff]
    %v394 = vld [vmem:[#allocation10 + $0x178] sm:$0xff]
    %v395 = vld [vmem:[#allocation10 + $0x180] sm:$0xff]
    %v396 = vld [vmem:[#allocation10 + $0x188] sm:$0xff]
    %v397 = vld [vmem:[#allocation10 + $0x190] sm:$0xff]
    %v398 = vld [vmem:[#allocation10 + $0x198] sm:$0xff]
    %v399 = vld [vmem:[#allocation10 + $0x1a0] sm:$0xff]
    %v400 = vld [vmem:[#allocation10 + $0x1a8] sm:$0xff]
    %v401 = vld [vmem:[#allocation10 + $0x1b0] sm:$0xff]
    %v402 = vld [vmem:[#allocation10 + $0x1b8] sm:$0xff]
    %v403 = vld [vmem:[#allocation10 + $0x1c0] sm:$0xff]
    %v404 = vld [vmem:[#allocation10 + $0x1c8] sm:$0xff]
    %v405 = vld [vmem:[#allocation10 + $0x1d0] sm:$0xff]
    %v406 = vld [vmem:[#allocation10 + $0x1d8] sm:$0xff]
    %v407 = vld [vmem:[#allocation10 + $0x1e0] sm:$0xff]
    %v408 = vld [vmem:[#allocation10 + $0x1e8] sm:$0xff]
    %v409 = vld [vmem:[#allocation10 + $0x1f0] sm:$0xff]
    %v410 = vld [vmem:[#allocation10 + $0x1f8] sm:$0xff]
    %s411 = scalar_lea.vmem [#allocation11], 1
    %v412 = vld [vmem:[%s411] ss:$4 sm:$0x3]
    %v414 = vperm.slane %v412, 0
    %v415 = vperm.slane %v412, 1
    %418 = vmatpush.msra.mxu0 %v377
    %419 = vmatpush.msra.mxu0 %v375
    %420 = vmatpush.msra.mxu0 %v373
    %421 = vmatpush.msra.mxu0 %v371
    %422 = vmatpush.msra.mxu0 %v369
    %423 = vmatpush.msra.mxu0 %v367
    %424 = vmatpush.msra.mxu0 %v365
    %425 = vmatpush.msra.mxu0 %v363
    %426 = vmatpush.msra.mxu0 %v361
    %427 = vmatpush.msra.mxu0 %v359
    %428 = vmatpush.msra.mxu0 %v357
    %429 = vmatpush.msra.mxu0 %v355
    %430 = vmatpush.msra.mxu0 %v353
    %431 = vmatpush.msra.mxu0 %v351
    %432 = vmatpush.msra.mxu0 %v349
    %433 = vmatpush.msra.mxu0 %v347
    %434 = vmatmul.f32.gmra.mxu0 %v343
    %v435 = vpop.f32.mrf.mxu0
    %v436 = vadd.f32 %v414, %v435
    %437 = vdwg.mxu0
    %438 = vmatpush.msra.mxu0 %v409
    %439 = vmatpush.msra.mxu0 %v407
    %440 = vmatpush.msra.mxu0 %v405
    %441 = vmatpush.msra.mxu0 %v403
    %442 = vmatpush.msra.mxu0 %v401
    %443 = vmatpush.msra.mxu0 %v399
    %444 = vmatpush.msra.mxu0 %v397
    %445 = vmatpush.msra.mxu0 %v395
    %446 = vmatpush.msra.mxu0 %v393
    %447 = vmatpush.msra.mxu0 %v391
    %448 = vmatpush.msra.mxu0 %v389
    %449 = vmatpush.msra.mxu0 %v387
    %450 = vmatpush.msra.mxu0 %v385
    %451 = vmatpush.msra.mxu0 %v383
    %452 = vmatpush.msra.mxu0 %v381
    %453 = vmatpush.msra.mxu0 %v379
    %454 = vmatmul.f32.gmra.mxu0 %v344
    %v455 = vpop.f32.mrf.mxu0
    %v456 = vadd.f32 %v436, %v455
    %457 = vdwg.mxu0
    %458 = vmatpush.msra.mxu0 %v378
    %459 = vmatpush.msra.mxu0 %v376
    %460 = vmatpush.msra.mxu0 %v374
    %461 = vmatpush.msra.mxu0 %v372
    %462 = vmatpush.msra.mxu0 %v370
    %463 = vmatpush.msra.mxu0 %v368
    %464 = vmatpush.msra.mxu0 %v366
    %465 = vmatpush.msra.mxu0 %v364
    %466 = vmatpush.msra.mxu0 %v362
    %467 = vmatpush.msra.mxu0 %v360
    %468 = vmatpush.msra.mxu0 %v358
    %469 = vmatpush.msra.mxu0 %v356
    %470 = vmatpush.msra.mxu0 %v354
    %471 = vmatpush.msra.mxu0 %v352
    %472 = vmatpush.msra.mxu0 %v350
    %473 = vmatpush.msra.mxu0 %v348
    %474 = vmatmul.f32.gmra.mxu0 %v343
    %v475 = vpop.f32.mrf.mxu0
    %v476 = vadd.f32 %v415, %v475
    %477 = vdwg.mxu0
    %478 = vmatpush.msra.mxu0 %v410
    %479 = vmatpush.msra.mxu0 %v408
    %480 = vmatpush.msra.mxu0 %v406
    %481 = vmatpush.msra.mxu0 %v404
    %482 = vmatpush.msra.mxu0 %v402
    %483 = vmatpush.msra.mxu0 %v400
    %484 = vmatpush.msra.mxu0 %v398
    %485 = vmatpush.msra.mxu0 %v396
    %486 = vmatpush.msra.mxu0 %v394
    %487 = vmatpush.msra.mxu0 %v392
    %488 = vmatpush.msra.mxu0 %v390
    %489 = vmatpush.msra.mxu0 %v388
    %490 = vmatpush.msra.mxu0 %v386
    %491 = vmatpush.msra.mxu0 %v384
    %492 = vmatpush.msra.mxu0 %v382
    %493 = vmatpush.msra.mxu0 %v380
    %494 = vmatmul.f32.gmra.mxu0 %v344
    %v495 = vpop.f32.mrf.mxu0
    %v496 = vadd.f32 %v476, %v495
    %497 = vdwg.mxu0
    %v498 = vmax.f32 %v456, 0.0
    %v499 = vmax.f32 %v496, 0.0
    %s500 = scalar_lea.vmem [#allocation10], 512
    %v501 = vld [vmem:[%s500] sm:$0xff]
    %v502 = vld [vmem:[%s500 + $0x8] sm:$0xff]
    %v503 = vld [vmem:[%s500 + $0x10] sm:$0xff]
    %v504 = vld [vmem:[%s500 + $0x18] sm:$0xff]
    %v505 = vld [vmem:[%s500 + $0x20] sm:$0xff]
    %v506 = vld [vmem:[%s500 + $0x28] sm:$0xff]
    %v507 = vld [vmem:[%s500 + $0x30] sm:$0xff]
    %v508 = vld [vmem:[%s500 + $0x38] sm:$0xff]
    %v509 = vld [vmem:[%s500 + $0x40] sm:$0xff]
    %v510 = vld [vmem:[%s500 + $0x48] sm:$0xff]
    %v511 = vld [vmem:[%s500 + $0x50] sm:$0xff]
    %v512 = vld [vmem:[%s500 + $0x58] sm:$0xff]
    %v513 = vld [vmem:[%s500 + $0x60] sm:$0xff]
    %v514 = vld [vmem:[%s500 + $0x68] sm:$0xff]
    %v515 = vld [vmem:[%s500 + $0x70] sm:$0xff]
    %v516 = vld [vmem:[%s500 + $0x78] sm:$0xff]
    %v517 = vld [vmem:[%s500 + $0x80] sm:$0xff]
    %v518 = vld [vmem:[%s500 + $0x88] sm:$0xff]
    %v519 = vld [vmem:[%s500 + $0x90] sm:$0xff]
    %v520 = vld [vmem:[%s500 + $0x98] sm:$0xff]
    %v521 = vld [vmem:[%s500 + $0xa0] sm:$0xff]
    %v522 = vld [vmem:[%s500 + $0xa8] sm:$0xff]
    %v523 = vld [vmem:[%s500 + $0xb0] sm:$0xff]
    %v524 = vld [vmem:[%s500 + $0xb8] sm:$0xff]
    %v525 = vld [vmem:[%s500 + $0xc0] sm:$0xff]
    %v526 = vld [vmem:[%s500 + $0xc8] sm:$0xff]
    %v527 = vld [vmem:[%s500 + $0xd0] sm:$0xff]
    %v528 = vld [vmem:[%s500 + $0xd8] sm:$0xff]
    %v529 = vld [vmem:[%s500 + $0xe0] sm:$0xff]
    %v530 = vld [vmem:[%s500 + $0xe8] sm:$0xff]
    %v531 = vld [vmem:[%s500 + $0xf0] sm:$0xff]
    %v532 = vld [vmem:[%s500 + $0xf8] sm:$0xff]
    %v533 = vld [vmem:[%s500 + $0x100] sm:$0xff]
    %v534 = vld [vmem:[%s500 + $0x108] sm:$0xff]
    %v535 = vld [vmem:[%s500 + $0x110] sm:$0xff]
    %v536 = vld [vmem:[%s500 + $0x118] sm:$0xff]
    %v537 = vld [vmem:[%s500 + $0x120] sm:$0xff]
    %v538 = vld [vmem:[%s500 + $0x128] sm:$0xff]
    %v539 = vld [vmem:[%s500 + $0x130] sm:$0xff]
    %v540 = vld [vmem:[%s500 + $0x138] sm:$0xff]
    %v541 = vld [vmem:[%s500 + $0x140] sm:$0xff]
    %v542 = vld [vmem:[%s500 + $0x148] sm:$0xff]
    %v543 = vld [vmem:[%s500 + $0x150] sm:$0xff]
    %v544 = vld [vmem:[%s500 + $0x158] sm:$0xff]
    %v545 = vld [vmem:[%s500 + $0x160] sm:$0xff]
    %v546 = vld [vmem:[%s500 + $0x168] sm:$0xff]
    %v547 = vld [vmem:[%s500 + $0x170] sm:$0xff]
    %v548 = vld [vmem:[%s500 + $0x178] sm:$0xff]
    %v549 = vld [vmem:[%s500 + $0x180] sm:$0xff]
    %v550 = vld [vmem:[%s500 + $0x188] sm:$0xff]
    %v551 = vld [vmem:[%s500 + $0x190] sm:$0xff]
    %v552 = vld [vmem:[%s500 + $0x198] sm:$0xff]
    %v553 = vld [vmem:[%s500 + $0x1a0] sm:$0xff]
    %v554 = vld [vmem:[%s500 + $0x1a8] sm:$0xff]
    %v555 = vld [vmem:[%s500 + $0x1b0] sm:$0xff]
    %v556 = vld [vmem:[%s500 + $0x1b8] sm:$0xff]
    %v557 = vld [vmem:[%s500 + $0x1c0] sm:$0xff]
    %v558 = vld [vmem:[%s500 + $0x1c8] sm:$0xff]
    %v559 = vld [vmem:[%s500 + $0x1d0] sm:$0xff]
    %v560 = vld [vmem:[%s500 + $0x1d8] sm:$0xff]
    %v561 = vld [vmem:[%s500 + $0x1e0] sm:$0xff]
    %v562 = vld [vmem:[%s500 + $0x1e8] sm:$0xff]
    %v563 = vld [vmem:[%s500 + $0x1f0] sm:$0xff]
    %v564 = vld [vmem:[%s500 + $0x1f8] sm:$0xff]
    %s565 = scalar_lea.vmem [#allocation11], 9
    %v566 = vld [vmem:[%s565] ss:$4 sm:$0x3]
    %v568 = vperm.slane %v566, 0
    %v569 = vperm.slane %v566, 1
    %572 = vmatpush.msra.mxu0 %v531
    %573 = vmatpush.msra.mxu0 %v529
    %574 = vmatpush.msra.mxu0 %v527
    %575 = vmatpush.msra.mxu0 %v525
    %576 = vmatpush.msra.mxu0 %v523
    %577 = vmatpush.msra.mxu0 %v521
    %578 = vmatpush.msra.mxu0 %v519
    %579 = vmatpush.msra.mxu0 %v517
    %580 = vmatpush.msra.mxu0 %v515
    %581 = vmatpush.msra.mxu0 %v513
    %582 = vmatpush.msra.mxu0 %v511
    %583 = vmatpush.msra.mxu0 %v509
    %584 = vmatpush.msra.mxu0 %v507
    %585 = vmatpush.msra.mxu0 %v505
    %586 = vmatpush.msra.mxu0 %v503
    %587 = vmatpush.msra.mxu0 %v501
    %588 = vmatmul.f32.gmra.mxu0 %v345
    %v589 = vpop.f32.mrf.mxu0
    %v590 = vadd.f32 %v568, %v589
    %591 = vdwg.mxu0
    %592 = vmatpush.msra.mxu0 %v563
    %593 = vmatpush.msra.mxu0 %v561
    %594 = vmatpush.msra.mxu0 %v559
    %595 = vmatpush.msra.mxu0 %v557
    %596 = vmatpush.msra.mxu0 %v555
    %597 = vmatpush.msra.mxu0 %v553
    %598 = vmatpush.msra.mxu0 %v551
    %599 = vmatpush.msra.mxu0 %v549
    %600 = vmatpush.msra.mxu0 %v547
    %601 = vmatpush.msra.mxu0 %v545
    %602 = vmatpush.msra.mxu0 %v543
    %603 = vmatpush.msra.mxu0 %v541
    %604 = vmatpush.msra.mxu0 %v539
    %605 = vmatpush.msra.mxu0 %v537
    %606 = vmatpush.msra.mxu0 %v535
    %607 = vmatpush.msra.mxu0 %v533
    %608 = vmatmul.f32.gmra.mxu0 %v346
    %v609 = vpop.f32.mrf.mxu0
    %v610 = vadd.f32 %v590, %v609
    %611 = vdwg.mxu0
    %612 = vmatpush.msra.mxu0 %v532
    %613 = vmatpush.msra.mxu0 %v530
    %614 = vmatpush.msra.mxu0 %v528
    %615 = vmatpush.msra.mxu0 %v526
    %616 = vmatpush.msra.mxu0 %v524
    %617 = vmatpush.msra.mxu0 %v522
    %618 = vmatpush.msra.mxu0 %v520
    %619 = vmatpush.msra.mxu0 %v518
    %620 = vmatpush.msra.mxu0 %v516
    %621 = vmatpush.msra.mxu0 %v514
    %622 = vmatpush.msra.mxu0 %v512
    %623 = vmatpush.msra.mxu0 %v510
    %624 = vmatpush.msra.mxu0 %v508
    %625 = vmatpush.msra.mxu0 %v506
    %626 = vmatpush.msra.mxu0 %v504
    %627 = vmatpush.msra.mxu0 %v502
    %628 = vmatmul.f32.gmra.mxu0 %v345
    %v629 = vpop.f32.mrf.mxu0
    %v630 = vadd.f32 %v569, %v629
    %631 = vdwg.mxu0
    %632 = vmatpush.msra.mxu0 %v564
    %633 = vmatpush.msra.mxu0 %v562
    %634 = vmatpush.msra.mxu0 %v560
    %635 = vmatpush.msra.mxu0 %v558
    %636 = vmatpush.msra.mxu0 %v556
    %637 = vmatpush.msra.mxu0 %v554
    %638 = vmatpush.msra.mxu0 %v552
    %639 = vmatpush.msra.mxu0 %v550
    %640 = vmatpush.msra.mxu0 %v548
    %641 = vmatpush.msra.mxu0 %v546
    %642 = vmatpush.msra.mxu0 %v544
    %643 = vmatpush.msra.mxu0 %v542
    %644 = vmatpush.msra.mxu0 %v540
    %645 = vmatpush.msra.mxu0 %v538
    %646 = vmatpush.msra.mxu0 %v536
    %647 = vmatpush.msra.mxu0 %v534
    %648 = vmatmul.f32.gmra.mxu0 %v346
    %v649 = vpop.f32.mrf.mxu0
    %v650 = vadd.f32 %v630, %v649
    %651 = vdwg.mxu0
    %v652 = vmax.f32 %v610, 0.0
    %v653 = vmax.f32 %v650, 0.0
    %v654 = vld [vmem:[%s5] ss:$2 sm:$0x3]
    %v656 = vperm.slane %v654, 0
    %v657 = vperm.slane %v654, 1
    %v660 = vmul.f32 %v498, %v656
    %v661 = vmul.f32 %v499, %v657
    %v662 = vadd.f32 %v660, %v661
    %663 = vadd.xlane.f32.xlu0 %v662
    %v664 = vpop.xlane.xlu0 %663
    %v665 = vld [vmem:[#allocation11 + $0x2] sm:$0x1]
    %v666 = vperm.slane %v665, 0
    %v667 = vadd.f32 %v664, %v666
    %s668 = scalar_lea.vmem %s5, 1
    %v669 = vld [vmem:[%s668] ss:$2 sm:$0x3]
    %v671 = vperm.slane %v669, 0
    %v672 = vperm.slane %v669, 1
    %v675 = vmul.f32 %v652, %v671
    %v676 = vmul.f32 %v653, %v672
    %v677 = vadd.f32 %v675, %v676
    %678 = vadd.xlane.f32.xlu0 %v677
    %v679 = vpop.xlane.xlu0 %678
    %v680 = vadd.f32 %v679, %v666
    %vm681 = vcmask 7168
    %v682 = vsel %vm681, %v667, %v680
    %vm683 = vcmask 15360
    %684 = vst.msk [vmem:[#allocation13] sm:$0xff] %vm683, %v682
    // Predicated region
    $region54: #{tpu_custom_call.1} parent=1 // pred_check
      _
    $region55: #{tpu_custom_call.1} parent=1 // pred_check_branch
      %686 = sbr.rel (0) target = $region57
    $region56: #{tpu_custom_call.1} parent=1 // pred_region
      %688 = vsyncadd [#allocation4], 96
      %s689 = sshll.u32 [#allocation13], 4
      %s690 = int_to_ptr.vmem [resolvable:$true] %s689
      %s691 = sshll.u32 %s7, 4
      %s692 = int_to_ptr.hbm [resolvable:$true] %s691
      %697 = dma.vmem_to_hbm [thread:$0]  %s690, 32, %s692, [#allocation4], 32, 32, 2
    $region57: #{tpu_custom_call.1} parent=1 // pred_fallthru
      _
    // Predicated region
    $region58: #{tpu_custom_call.1} parent=1 // pred_check
      _
    $region59: #{tpu_custom_call.1} parent=1 // pred_check_branch
      %699 = sbr.rel (0) target = $region61
    $region60: #{tpu_custom_call.1} parent=1 // pred_region
      %701 = dma.done [#allocation4], 128
    $region61: #{tpu_custom_call.1} parent=1 // pred_fallthru
      _
    %702 = vsyncpa [#allocation3], 1
    %703 = vsyncpa [#allocation6], 1
    %704 = vsyncpa [#allocation9], 1
    %705 = vsyncpa [#allocation12], 1
    %706 = vsyncpa [#allocation4], 1

</llo_original>
